<compile_context>
chip_gen: v5e
topology: v5e:2x2
jax: 0.10.0
libtpu: 0.0.40
codegen_flags: <defaults>
</compile_context>

<pallas_src>
import functools

import jax
import jax.numpy as jnp
from jax.experimental import pallas as pl
from jax.experimental.pallas import tpu as pltpu


def _round_up(a, m):
    return ((a + m - 1) // m) * m


def _ipow(v, e):
    """Static power: integer exponents become repeated multiplies (VPU only)."""
    if isinstance(e, int):
        if e == 0:
            return jnp.ones_like(v)
        r = v
        for _ in range(e - 1):
            r = r * v
        return r
    return v ** e  # non-integer exponent: EUP pow fallback


def _ipow_scalar(v, e):
    """Python-scalar mirror of _ipow (used for the pad correction)."""
    if isinstance(e, int):
        if e == 0:
            return 1.0
        r = v
        for _ in range(e - 1):
            r = r * v
        return r
    return v ** e


def _make_kernel(p, tr):
    blocks8 = tr // 8

    def kernel(x_ref, t_ref, np_ref, dp_ref, nn_ref, dn_ref,
               np_acc, dp_acc, nn_acc, dn_acc):
        j = pl.program_id(1)

        @pl.when(j == 0)
        def _init():
            np_acc[...] = jnp.zeros_like(np_acc)
            dp_acc[...] = jnp.zeros_like(dp_acc)
            nn_acc[...] = jnp.zeros_like(nn_acc)
            dn_acc[...] = jnp.zeros_like(dn_acc)

        x = x_ref[...].astype(jnp.float32)   # (B, TR, 128) logits
        t = t_ref[...].astype(jnp.float32)   # (B, TR, 128) targets

        # sigmoid = 1 / (1 + exp(-x)): exp on the EUP, exact reciprocal.
        pr = pl.reciprocal(1.0 + jnp.exp(-x), approx=False)
        q = 1.0 - pr
        u = 1.0 - t

        pre_pos = pr * _ipow(q, p)           # predict * (1-predict)^p
        pre_neg = q * _ipow(pr, p)           # (1-predict) * predict^p

        # TODO(synk): for guaranteed-binary targets, t^p == t and (1-t)^p == 1-t
        # would save two multiplies per element (only matters when VALU-bound).
        num_pos_c = pre_pos * t
        den_pos_c = _ipow(pre_pos, p) + _ipow(t, p)
        num_neg_c = pre_neg * t              # NB: module uses `target` here too
        den_neg_c = _ipow(pre_neg, p) + _ipow(u, p)

        def fold(v):
            # (B, TR, 128) -> (B, 8, 128); reshape is tile-aligned (free) and
            # the sum over the TR//8 axis is pure vreg-wise VPU adds (no XLU).
            b = v.shape[0]
            return jnp.sum(v.reshape(b, blocks8, 8, 128), axis=1)

        np_acc[...] += fold(num_pos_c)
        dp_acc[...] += fold(den_pos_c)
        nn_acc[...] += fold(num_neg_c)
        dn_acc[...] += fold(den_neg_c)

        @pl.when(j == pl.num_programs(1) - 1)
        def _finalize():
            def red(a):                      # (B, 8, 128) -> (1, B, 1, 1)
                s = jnp.sum(a, axis=2, keepdims=True)   # lane reduce
                s = jnp.sum(s, axis=1, keepdims=True)   # sublane reduce
                return s.reshape(1, a.shape[0], 1, 1)
            np_ref[...] = red(np_acc[...])
            dp_ref[...] = red(dp_acc[...])
            nn_ref[...] = red(nn_acc[...])
            dn_ref[...] = red(dn_acc[...])

    return kernel


@functools.partial(jax.jit, static_argnames=("p", "alpha", "reduction"))
def mldcs_loss(x, target, *, p=2, alpha=0.5, reduction="mean"):
    assert x.shape[0] == target.shape[0], \
        "predict & target batch size don't match"
    B = x.shape[0]

    # Stream in the ORIGINAL dtypes; the f32 cast happens in-kernel.  (For
    # binary labels, pass bf16/int8 targets to cut HBM bytes further.)
    xf = x.reshape(B, -1)
    tf = target.reshape(B, -1)
    N = xf.shape[1]

    # Lane/sublane-dense layout (B, rows, 128), split into `n_slabs` slabs
    # (leading "parallel" grid axis -> both TensorCores on v7x) and `steps`
    # blocks of TR rows along the accumulated reduction axis.
    rows0 = -(-N // 128)
    n_slabs = 2 if rows0 >= 16 else 1
    rows_per_slab = _round_up(-(-rows0 // n_slabs), 8)

    # ~2-4 MiB combined (x+t) payload per block: amortizes the ~0.35 us/step
    # pipeline overhead while 2 inputs x 2 buffers stay well inside VMEM.
    bytes_per_row = B * 128 * (xf.dtype.itemsize + tf.dtype.itemsize)
    tr_target = max(8, ((8 << 20) // bytes_per_row) // 8 * 8)
    steps = -(-rows_per_slab // tr_target)
    TR = _round_up(-(-rows_per_slab // steps), 8)
    rows_per_slab = steps * TR
    rows = n_slabs * rows_per_slab
    N_pad = rows * 128

    if N_pad != N:
        # TODO(synk): in a real pipeline fuse this pad with the producer of
        # x/target (or keep C*H*W a multiple of 128) to avoid the extra HBM
        # pass; the padded elements are corrected for exactly below, so no
        # per-step mask runs in the kernel.
        xf = jnp.pad(xf, ((0, 0), (0, N_pad - N)))
        tf = jnp.pad(tf, ((0, 0), (0, N_pad - N)))
    x3 = xf.reshape(B, rows, 128)
    t3 = tf.reshape(B, rows, 128)

    # VMEM: 2 pipeline buffers x (x block + t block) + 4 tiny accumulators.
    in_bytes = 2 * TR * bytes_per_row
    acc_bytes = 4 * B * 8 * 128 * 4
    vmem_limit = int(max(in_bytes + acc_bytes + (6 << 20), 24 << 20))

    kernel = _make_kernel(p, TR)
    part_shape = jax.ShapeDtypeStruct((n_slabs, B, 1, 1), jnp.float32)
    part_spec = pl.BlockSpec((1, B, 1, 1), lambda s, j: (s, 0, 0, 0))
    in_spec = pl.BlockSpec((B, TR, 128), lambda s, j: (0, s * steps + j, 0))

    np_s, dp_s, nn_s, dn_s = pl.pallas_call(
        kernel,
        out_shape=(part_shape,) * 4,
        grid_spec=pltpu.PrefetchScalarGridSpec(
            num_scalar_prefetch=0,
            grid=(n_slabs, steps),
            in_specs=[in_spec, in_spec],
            out_specs=(part_spec,) * 4,
            scratch_shapes=[pltpu.VMEM((B, 8, 128), jnp.float32)] * 4,
        ),
        compiler_params=pltpu.CompilerParams(
            dimension_semantics=("parallel", "arbitrary"),
            vmem_limit_bytes=vmem_limit),
    )(x3, t3)

    num_pos = jnp.sum(np_s, axis=(0, 2, 3))          # (B,)
    den_pos = jnp.sum(dp_s, axis=(0, 2, 3))
    num_neg = jnp.sum(nn_s, axis=(0, 2, 3))
    den_neg = jnp.sum(dn_s, axis=(0, 2, 3))

    # Exact correction for the zero-padded tail: x=0, t=0 => sigmoid(0)=0.5,
    # pre_pos = pre_neg = 0.5 * 0.5^p, contributing a known constant per pad
    # element to each denominator (numerators get 0 since t=0).
    pad_count = float(N_pad - N)
    if pad_count:
        c = 0.5 * _ipow_scalar(0.5, p)
        den_pos_pad = _ipow_scalar(c, p) + _ipow_scalar(0.0, p)
        den_neg_pad = _ipow_scalar(c, p) + _ipow_scalar(1.0, p)
        den_pos = den_pos - jnp.float32(pad_count * den_pos_pad)
        den_neg = den_neg - jnp.float32(pad_count * den_neg_pad)

    loss_pos = 1.0 - 2.0 * num_pos / den_pos
    loss_neg = 1.0 - 2.0 * num_neg / den_neg
    loss = alpha * loss_pos + (1.0 - alpha) * loss_neg

    if reduction == "mean":
        return jnp.mean(loss)
    elif reduction == "sum":
        return jnp.sum(loss)
    elif reduction == "none":
        return loss
    else:
        raise Exception("Unexpected reduction {}".format(reduction))


def _reference(x, target, p=2, alpha=0.5):
    """Pure-JAX mirror of the PyTorch MLDCSLoss forward (reduction='mean')."""
    B = x.shape[0]
    pr = jax.nn.sigmoid(x.reshape(B, -1).astype(jnp.float32))
    t = target.reshape(B, -1).astype(jnp.float32)
    pre_pos = pr * (1.0 - pr) ** p
    num_pos = jnp.sum(pre_pos * t, axis=1)
    den_pos = jnp.sum(pre_pos ** p + t ** p, axis=1)
    loss_pos = 1.0 - 2.0 * num_pos / den_pos
    pre_neg = (1.0 - pr) * pr ** p
    num_neg = jnp.sum(pre_neg * t, axis=1)
    den_neg = jnp.sum(pre_neg ** p + (1.0 - t) ** p, axis=1)
    loss_neg = 1.0 - 2.0 * num_neg / den_neg
    loss = alpha * loss_pos + (1.0 - alpha) * loss_neg
    return jnp.mean(loss)


if __name__ == "__main__":
    key = jax.random.PRNGKey(0)
    kx, kt = jax.random.split(key)

    B, C, H, W = 2, 4, 16, 16
    x = jax.random.normal(kx, (B, C, H, W), dtype=jnp.float32)               # logits
    target = jax.random.bernoulli(kt, 0.3, (B, C, H, W)).astype(jnp.float32)

    out = jax.block_until_ready(mldcs_loss(x, target))
    ref = _reference(x, target)
    assert jnp.allclose(out, ref, rtol=1e-4, atol=1e-4), (out, ref)

    # Ragged feature count (N % 128 != 0): exercises the pad-correction path.
    x2 = jax.random.normal(kx, (2, 3, 7, 11), dtype=jnp.float32)
    t2 = jax.random.bernoulli(kt, 0.3, (2, 3, 7, 11)).astype(jnp.float32)
    out2 = jax.block_until_ready(mldcs_loss(x2, t2))
    ref2 = _reference(x2, t2)
    assert jnp.allclose(out2, ref2, rtol=1e-4, atol=1e-4), (out2, ref2)

    print("KERNEL_OK")
</pallas_src>

<mosaic_0001>
module attributes {stable_mosaic.version = 11 : i64} {
  func.func @kernel(%arg0: i32, %arg1: i32, %arg2: memref<2x8x128xf32, #tpu.memory_space<vmem>>, %arg3: memref<2x8x128xf32, #tpu.memory_space<vmem>>, %arg4: memref<1x2x1x1xf32, #tpu.memory_space<vmem>>, %arg5: memref<1x2x1x1xf32, #tpu.memory_space<vmem>>, %arg6: memref<1x2x1x1xf32, #tpu.memory_space<vmem>>, %arg7: memref<1x2x1x1xf32, #tpu.memory_space<vmem>>, %arg8: memref<2x8x128xf32, #tpu.memory_space<vmem>>, %arg9: memref<2x8x128xf32, #tpu.memory_space<vmem>>, %arg10: memref<2x8x128xf32, #tpu.memory_space<vmem>>, %arg11: memref<2x8x128xf32, #tpu.memory_space<vmem>>) attributes {dimension_semantics = [#tpu.dimension_semantics<parallel>, #tpu.dimension_semantics<arbitrary>], iteration_bounds = array<i64: 1, 1>, scalar_prefetch = 0 : i64, scratch_operands = 4 : i64, tpu.core_type = #tpu.core_type<tc>, window_params = [{transform_indices = @transform_0, window_bounds = array<i64: 2, 8, 128>}, {transform_indices = @transform_1, window_bounds = array<i64: 2, 8, 128>}, {transform_indices = @transform_2, window_bounds = array<i64: 1, 2, 1, 1>}, {transform_indices = @transform_3, window_bounds = array<i64: 1, 2, 1, 1>}, {transform_indices = @transform_4, window_bounds = array<i64: 1, 2, 1, 1>}, {transform_indices = @transform_5, window_bounds = array<i64: 1, 2, 1, 1>}]} {
    %c0_i32 = arith.constant 0 : i32
    %0 = arith.cmpi eq, %arg1, %c0_i32 : i32
    %1 = arith.extui %0 : i1 to i32
    %c0_i32_0 = arith.constant 0 : i32
    %2 = arith.cmpi ne, %1, %c0_i32_0 : i32
    scf.if %2 {
      %cst_39 = arith.constant 0.000000e+00 : f32
      %50 = vector.broadcast %cst_39 : f32 to vector<2x8x128xf32>
      %c0_40 = arith.constant 0 : index
      %c0_41 = arith.constant 0 : index
      %c0_42 = arith.constant 0 : index
      %51 = vector.load %arg8[%c0_40, %c0_41, %c0_42] : memref<2x8x128xf32, #tpu.memory_space<vmem>>, vector<2x8x128xf32>
      tpu.vector_store %arg8[%c0_40, %c0_41, %c0_42], %50 {strides = array<i32>} : memref<2x8x128xf32, #tpu.memory_space<vmem>>, vector<2x8x128xf32>,
      %cst_43 = arith.constant 0.000000e+00 : f32
      %52 = vector.broadcast %cst_43 : f32 to vector<2x8x128xf32>
      %c0_44 = arith.constant 0 : index
      %c0_45 = arith.constant 0 : index
      %c0_46 = arith.constant 0 : index
      %53 = vector.load %arg9[%c0_44, %c0_45, %c0_46] : memref<2x8x128xf32, #tpu.memory_space<vmem>>, vector<2x8x128xf32>
      tpu.vector_store %arg9[%c0_44, %c0_45, %c0_46], %52 {strides = array<i32>} : memref<2x8x128xf32, #tpu.memory_space<vmem>>, vector<2x8x128xf32>,
      %cst_47 = arith.constant 0.000000e+00 : f32
      %54 = vector.broadcast %cst_47 : f32 to vector<2x8x128xf32>
      %c0_48 = arith.constant 0 : index
      %c0_49 = arith.constant 0 : index
      %c0_50 = arith.constant 0 : index
      %55 = vector.load %arg10[%c0_48, %c0_49, %c0_50] : memref<2x8x128xf32, #tpu.memory_space<vmem>>, vector<2x8x128xf32>
      tpu.vector_store %arg10[%c0_48, %c0_49, %c0_50], %54 {strides = array<i32>} : memref<2x8x128xf32, #tpu.memory_space<vmem>>, vector<2x8x128xf32>,
      %cst_51 = arith.constant 0.000000e+00 : f32
      %56 = vector.broadcast %cst_51 : f32 to vector<2x8x128xf32>
      %c0_52 = arith.constant 0 : index
      %c0_53 = arith.constant 0 : index
      %c0_54 = arith.constant 0 : index
      %57 = vector.load %arg11[%c0_52, %c0_53, %c0_54] : memref<2x8x128xf32, #tpu.memory_space<vmem>>, vector<2x8x128xf32>
      tpu.vector_store %arg11[%c0_52, %c0_53, %c0_54], %56 {strides = array<i32>} : memref<2x8x128xf32, #tpu.memory_space<vmem>>, vector<2x8x128xf32>,
    } else {
    }
    %c0 = arith.constant 0 : index
    %c0_1 = arith.constant 0 : index
    %c0_2 = arith.constant 0 : index
    %3 = vector.load %arg2[%c0, %c0_1, %c0_2] : memref<2x8x128xf32, #tpu.memory_space<vmem>>, vector<2x8x128xf32>
    %c0_3 = arith.constant 0 : index
    %c0_4 = arith.constant 0 : index
    %c0_5 = arith.constant 0 : index
    %4 = vector.load %arg3[%c0_3, %c0_4, %c0_5] : memref<2x8x128xf32, #tpu.memory_space<vmem>>, vector<2x8x128xf32>
    %cst = arith.constant 0.000000e+00 : f32
    %5 = vector.broadcast %cst : f32 to vector<2x8x128xf32>
    %6 = arith.subf %5, %3 : vector<2x8x128xf32>
    %7 = math.exp %6 : vector<2x8x128xf32>
    %cst_6 = arith.constant 1.000000e+00 : f32
    %8 = vector.broadcast %cst_6 : f32 to vector<2x8x128xf32>
    %9 = arith.addf %8, %7 : vector<2x8x128xf32>
    %10 = tpu.reciprocal %9 : vector<2x8x128xf32> -> vector<2x8x128xf32>
    %cst_7 = arith.constant 1.000000e+00 : f32
    %11 = vector.broadcast %cst_7 : f32 to vector<2x8x128xf32>
    %12 = arith.subf %11, %10 : vector<2x8x128xf32>
    %cst_8 = arith.constant 1.000000e+00 : f32
    %13 = vector.broadcast %cst_8 : f32 to vector<2x8x128xf32>
    %14 = arith.subf %13, %4 : vector<2x8x128xf32>
    %15 = arith.mulf %12, %12 : vector<2x8x128xf32>
    %16 = arith.mulf %10, %15 : vector<2x8x128xf32>
    %17 = arith.mulf %10, %10 : vector<2x8x128xf32>
    %18 = arith.mulf %12, %17 : vector<2x8x128xf32>
    %19 = arith.mulf %16, %4 : vector<2x8x128xf32>
    %20 = arith.mulf %16, %16 : vector<2x8x128xf32>
    %21 = arith.mulf %4, %4 : vector<2x8x128xf32>
    %22 = arith.addf %20, %21 : vector<2x8x128xf32>
    %23 = arith.mulf %18, %4 : vector<2x8x128xf32>
    %24 = arith.mulf %18, %18 : vector<2x8x128xf32>
    %25 = arith.mulf %14, %14 : vector<2x8x128xf32>
    %26 = arith.addf %24, %25 : vector<2x8x128xf32>
    %c0_9 = arith.constant 0 : index
    %c0_10 = arith.constant 0 : index
    %c0_11 = arith.constant 0 : index
    %27 = vector.load %arg8[%c0_9, %c0_10, %c0_11] : memref<2x8x128xf32, #tpu.memory_space<vmem>>, vector<2x8x128xf32>
    %28 = vector.shape_cast %19 : vector<2x8x128xf32> to vector<2x1x8x128xf32>
    %cst_12 = arith.constant dense<0.000000e+00> : vector<2x8x128xf32>
    %29 = vector.multi_reduction <add>, %28, %cst_12 [1] : vector<2x1x8x128xf32> to vector<2x8x128xf32>
    %30 = arith.addf %27, %29 : vector<2x8x128xf32>
    %c0_13 = arith.constant 0 : index
    %c0_14 = arith.constant 0 : index
    %c0_15 = arith.constant 0 : index
    %31 = vector.load %arg8[%c0_13, %c0_14, %c0_15] : memref<2x8x128xf32, #tpu.memory_space<vmem>>, vector<2x8x128xf32>
    tpu.vector_store %arg8[%c0_13, %c0_14, %c0_15], %30 {strides = array<i32>} : memref<2x8x128xf32, #tpu.memory_space<vmem>>, vector<2x8x128xf32>,
    %c0_16 = arith.constant 0 : index
    %c0_17 = arith.constant 0 : index
    %c0_18 = arith.constant 0 : index
    %32 = vector.load %arg9[%c0_16, %c0_17, %c0_18] : memref<2x8x128xf32, #tpu.memory_space<vmem>>, vector<2x8x128xf32>
    %33 = vector.shape_cast %22 : vector<2x8x128xf32> to vector<2x1x8x128xf32>
    %cst_19 = arith.constant dense<0.000000e+00> : vector<2x8x128xf32>
    %34 = vector.multi_reduction <add>, %33, %cst_19 [1] : vector<2x1x8x128xf32> to vector<2x8x128xf32>
    %35 = arith.addf %32, %34 : vector<2x8x128xf32>
    %c0_20 = arith.constant 0 : index
    %c0_21 = arith.constant 0 : index
    %c0_22 = arith.constant 0 : index
    %36 = vector.load %arg9[%c0_20, %c0_21, %c0_22] : memref<2x8x128xf32, #tpu.memory_space<vmem>>, vector<2x8x128xf32>
    tpu.vector_store %arg9[%c0_20, %c0_21, %c0_22], %35 {strides = array<i32>} : memref<2x8x128xf32, #tpu.memory_space<vmem>>, vector<2x8x128xf32>,
    %c0_23 = arith.constant 0 : index
    %c0_24 = arith.constant 0 : index
    %c0_25 = arith.constant 0 : index
    %37 = vector.load %arg10[%c0_23, %c0_24, %c0_25] : memref<2x8x128xf32, #tpu.memory_space<vmem>>, vector<2x8x128xf32>
    %38 = vector.shape_cast %23 : vector<2x8x128xf32> to vector<2x1x8x128xf32>
    %cst_26 = arith.constant dense<0.000000e+00> : vector<2x8x128xf32>
    %39 = vector.multi_reduction <add>, %38, %cst_26 [1] : vector<2x1x8x128xf32> to vector<2x8x128xf32>
    %40 = arith.addf %37, %39 : vector<2x8x128xf32>
    %c0_27 = arith.constant 0 : index
    %c0_28 = arith.constant 0 : index
    %c0_29 = arith.constant 0 : index
    %41 = vector.load %arg10[%c0_27, %c0_28, %c0_29] : memref<2x8x128xf32, #tpu.memory_space<vmem>>, vector<2x8x128xf32>
    tpu.vector_store %arg10[%c0_27, %c0_28, %c0_29], %40 {strides = array<i32>} : memref<2x8x128xf32, #tpu.memory_space<vmem>>, vector<2x8x128xf32>,
    %c0_30 = arith.constant 0 : index
    %c0_31 = arith.constant 0 : index
    %c0_32 = arith.constant 0 : index
    %42 = vector.load %arg11[%c0_30, %c0_31, %c0_32] : memref<2x8x128xf32, #tpu.memory_space<vmem>>, vector<2x8x128xf32>
    %43 = vector.shape_cast %26 : vector<2x8x128xf32> to vector<2x1x8x128xf32>
    %cst_33 = arith.constant dense<0.000000e+00> : vector<2x8x128xf32>
    %44 = vector.multi_reduction <add>, %43, %cst_33 [1] : vector<2x1x8x128xf32> to vector<2x8x128xf32>
    %45 = arith.addf %42, %44 : vector<2x8x128xf32>
    %c0_34 = arith.constant 0 : index
    %c0_35 = arith.constant 0 : index
    %c0_36 = arith.constant 0 : index
    %46 = vector.load %arg11[%c0_34, %c0_35, %c0_36] : memref<2x8x128xf32, #tpu.memory_space<vmem>>, vector<2x8x128xf32>
    tpu.vector_store %arg11[%c0_34, %c0_35, %c0_36], %45 {strides = array<i32>} : memref<2x8x128xf32, #tpu.memory_space<vmem>>, vector<2x8x128xf32>,
    %c0_i32_37 = arith.constant 0 : i32
    %47 = arith.cmpi eq, %arg1, %c0_i32_37 : i32
    %48 = arith.extui %47 : i1 to i32
    %c0_i32_38 = arith.constant 0 : i32
    %49 = arith.cmpi ne, %48, %c0_i32_38 : i32
    scf.if %49 {
      %c0_39 = arith.constant 0 : index
      %c0_40 = arith.constant 0 : index
      %c0_41 = arith.constant 0 : index
      %50 = vector.load %arg8[%c0_39, %c0_40, %c0_41] : memref<2x8x128xf32, #tpu.memory_space<vmem>>, vector<2x8x128xf32>
      %cst_42 = arith.constant dense<0.000000e+00> : vector<2x8xf32>
      %51 = vector.multi_reduction <add>, %50, %cst_42 [2] : vector<2x8x128xf32> to vector<2x8xf32>
      %52 = vector.shape_cast %51 : vector<2x8xf32> to vector<2x8x1xf32>
      %cst_43 = arith.constant dense<0.000000e+00> : vector<2x1xf32>
      %53 = vector.multi_reduction <add>, %52, %cst_43 [1] : vector<2x8x1xf32> to vector<2x1xf32>
      %54 = vector.shape_cast %53 : vector<2x1xf32> to vector<2x1x1xf32>
      %55 = vector.shape_cast %54 : vector<2x1x1xf32> to vector<1x2x1x1xf32>
      %c0_44 = arith.constant 0 : index
      %c0_45 = arith.constant 0 : index
      %c0_46 = arith.constant 0 : index
      %c0_47 = arith.constant 0 : index
      %56 = vector.load %arg4[%c0_44, %c0_45, %c0_46, %c0_47] : memref<1x2x1x1xf32, #tpu.memory_space<vmem>>, vector<1x2x1x1xf32>
      tpu.vector_store %arg4[%c0_44, %c0_45, %c0_46, %c0_47], %55 {strides = array<i32>} : memref<1x2x1x1xf32, #tpu.memory_space<vmem>>, vector<1x2x1x1xf32>,
      %c0_48 = arith.constant 0 : index
      %c0_49 = arith.constant 0 : index
      %c0_50 = arith.constant 0 : index
      %57 = vector.load %arg9[%c0_48, %c0_49, %c0_50] : memref<2x8x128xf32, #tpu.memory_space<vmem>>, vector<2x8x128xf32>
      %cst_51 = arith.constant dense<0.000000e+00> : vector<2x8xf32>
      %58 = vector.multi_reduction <add>, %57, %cst_51 [2] : vector<2x8x128xf32> to vector<2x8xf32>
      %59 = vector.shape_cast %58 : vector<2x8xf32> to vector<2x8x1xf32>
      %cst_52 = arith.constant dense<0.000000e+00> : vector<2x1xf32>
      %60 = vector.multi_reduction <add>, %59, %cst_52 [1] : vector<2x8x1xf32> to vector<2x1xf32>
      %61 = vector.shape_cast %60 : vector<2x1xf32> to vector<2x1x1xf32>
      %62 = vector.shape_cast %61 : vector<2x1x1xf32> to vector<1x2x1x1xf32>
      %c0_53 = arith.constant 0 : index
      %c0_54 = arith.constant 0 : index
      %c0_55 = arith.constant 0 : index
      %c0_56 = arith.constant 0 : index
      %63 = vector.load %arg5[%c0_53, %c0_54, %c0_55, %c0_56] : memref<1x2x1x1xf32, #tpu.memory_space<vmem>>, vector<1x2x1x1xf32>
      tpu.vector_store %arg5[%c0_53, %c0_54, %c0_55, %c0_56], %62 {strides = array<i32>} : memref<1x2x1x1xf32, #tpu.memory_space<vmem>>, vector<1x2x1x1xf32>,
      %c0_57 = arith.constant 0 : index
      %c0_58 = arith.constant 0 : index
      %c0_59 = arith.constant 0 : index
      %64 = vector.load %arg10[%c0_57, %c0_58, %c0_59] : memref<2x8x128xf32, #tpu.memory_space<vmem>>, vector<2x8x128xf32>
      %cst_60 = arith.constant dense<0.000000e+00> : vector<2x8xf32>
      %65 = vector.multi_reduction <add>, %64, %cst_60 [2] : vector<2x8x128xf32> to vector<2x8xf32>
      %66 = vector.shape_cast %65 : vector<2x8xf32> to vector<2x8x1xf32>
      %cst_61 = arith.constant dense<0.000000e+00> : vector<2x1xf32>
      %67 = vector.multi_reduction <add>, %66, %cst_61 [1] : vector<2x8x1xf32> to vector<2x1xf32>
      %68 = vector.shape_cast %67 : vector<2x1xf32> to vector<2x1x1xf32>
      %69 = vector.shape_cast %68 : vector<2x1x1xf32> to vector<1x2x1x1xf32>
      %c0_62 = arith.constant 0 : index
      %c0_63 = arith.constant 0 : index
      %c0_64 = arith.constant 0 : index
      %c0_65 = arith.constant 0 : index
      %70 = vector.load %arg6[%c0_62, %c0_63, %c0_64, %c0_65] : memref<1x2x1x1xf32, #tpu.memory_space<vmem>>, vector<1x2x1x1xf32>
      tpu.vector_store %arg6[%c0_62, %c0_63, %c0_64, %c0_65], %69 {strides = array<i32>} : memref<1x2x1x1xf32, #tpu.memory_space<vmem>>, vector<1x2x1x1xf32>,
      %c0_66 = arith.constant 0 : index
      %c0_67 = arith.constant 0 : index
      %c0_68 = arith.constant 0 : index
      %71 = vector.load %arg11[%c0_66, %c0_67, %c0_68] : memref<2x8x128xf32, #tpu.memory_space<vmem>>, vector<2x8x128xf32>
      %cst_69 = arith.constant dense<0.000000e+00> : vector<2x8xf32>
      %72 = vector.multi_reduction <add>, %71, %cst_69 [2] : vector<2x8x128xf32> to vector<2x8xf32>
      %73 = vector.shape_cast %72 : vector<2x8xf32> to vector<2x8x1xf32>
      %cst_70 = arith.constant dense<0.000000e+00> : vector<2x1xf32>
      %74 = vector.multi_reduction <add>, %73, %cst_70 [1] : vector<2x8x1xf32> to vector<2x1xf32>
      %75 = vector.shape_cast %74 : vector<2x1xf32> to vector<2x1x1xf32>
      %76 = vector.shape_cast %75 : vector<2x1x1xf32> to vector<1x2x1x1xf32>
      %c0_71 = arith.constant 0 : index
      %c0_72 = arith.constant 0 : index
      %c0_73 = arith.constant 0 : index
      %c0_74 = arith.constant 0 : index
      %77 = vector.load %arg7[%c0_71, %c0_72, %c0_73, %c0_74] : memref<1x2x1x1xf32, #tpu.memory_space<vmem>>, vector<1x2x1x1xf32>
      tpu.vector_store %arg7[%c0_71, %c0_72, %c0_73, %c0_74], %76 {strides = array<i32>} : memref<1x2x1x1xf32, #tpu.memory_space<vmem>>, vector<1x2x1x1xf32>,
    } else {
    }
    return
  }
  func.func @transform_0(%arg0: i32, %arg1: i32) -> (i32, i32, i32) {
    %c1_i32 = arith.constant 1 : i32
    %0 = arith.muli %arg0, %c1_i32 : i32
    %1 = arith.addi %0, %arg1 : i32
    %c0_i32 = arith.constant 0 : i32
    %c0_i32_0 = arith.constant 0 : i32
    %c0_i32_1 = arith.constant 0 : i32
    return %c0_i32, %1, %c0_i32_0 : i32, i32, i32
  }
  func.func @transform_1(%arg0: i32, %arg1: i32) -> (i32, i32, i32) {
    %c1_i32 = arith.constant 1 : i32
    %0 = arith.muli %arg0, %c1_i32 : i32
    %1 = arith.addi %0, %arg1 : i32
    %c0_i32 = arith.constant 0 : i32
    %c0_i32_0 = arith.constant 0 : i32
    %c0_i32_1 = arith.constant 0 : i32
    return %c0_i32, %1, %c0_i32_0 : i32, i32, i32
  }
  func.func @transform_2(%arg0: i32, %arg1: i32) -> (i32, i32, i32, i32) {
    %c0_i32 = arith.constant 0 : i32
    %c0_i32_0 = arith.constant 0 : i32
    %c0_i32_1 = arith.constant 0 : i32
    %c0_i32_2 = arith.constant 0 : i32
    return %arg0, %c0_i32, %c0_i32_0, %c0_i32_1 : i32, i32, i32, i32
  }
  func.func @transform_3(%arg0: i32, %arg1: i32) -> (i32, i32, i32, i32) {
    %c0_i32 = arith.constant 0 : i32
    %c0_i32_0 = arith.constant 0 : i32
    %c0_i32_1 = arith.constant 0 : i32
    %c0_i32_2 = arith.constant 0 : i32
    return %arg0, %c0_i32, %c0_i32_0, %c0_i32_1 : i32, i32, i32, i32
  }
  func.func @transform_4(%arg0: i32, %arg1: i32) -> (i32, i32, i32, i32) {
    %c0_i32 = arith.constant 0 : i32
    %c0_i32_0 = arith.constant 0 : i32
    %c0_i32_1 = arith.constant 0 : i32
    %c0_i32_2 = arith.constant 0 : i32
    return %arg0, %c0_i32, %c0_i32_0, %c0_i32_1 : i32, i32, i32, i32
  }
  func.func @transform_5(%arg0: i32, %arg1: i32) -> (i32, i32, i32, i32) {
    %c0_i32 = arith.constant 0 : i32
    %c0_i32_0 = arith.constant 0 : i32
    %c0_i32_1 = arith.constant 0 : i32
    %c0_i32_2 = arith.constant 0 : i32
    return %arg0, %c0_i32, %c0_i32_0, %c0_i32_1 : i32, i32, i32, i32
  }
}

</mosaic_0001>

<llo_original>
// kernel: mldcs_loss.1
$region0: #{mldcs_loss.1}
  #allocation0 [shape = 'u32[]', space=smem, size = 0x4, offset = 0x4, fixed_abs, tag = 'smem constant byte address 0x4 - core index']
  #allocation1 [shape = 'u32[72,128]{1,0:T(1,128)}', space=vmem, size = 0x9000, scoped, tag = 'internal scratch']
  #allocation2 [shape = 'f32[2,8,128]{2,1,0:T(8,128)}', space=vmem, size = 0x2000, scoped, tag = 'scratch operand']
  #allocation3 [shape = 'f32[2,8,128]{2,1,0:T(8,128)}', space=vmem, size = 0x2000, scoped, tag = 'scratch operand']
  #allocation4 [shape = 'f32[2,8,128]{2,1,0:T(8,128)}', space=vmem, size = 0x2000, scoped, tag = 'scratch operand']
  #allocation5 [shape = 'f32[2,8,128]{2,1,0:T(8,128)}', space=vmem, size = 0x2000, scoped, tag = 'scratch operand']
  %s0 = inlined_call_operand.vmem [shape: f32[2,8,128], index: 0, kind: input, shape index: {}]
  %s1 = inlined_call_operand.vmem [shape: f32[2,8,128], index: 1, kind: input, shape index: {}]
  %s2 = inlined_call_operand.vmem [shape: f32[1,2,1,1], index: 2, kind: output, shape index: {0}]
  %s3 = inlined_call_operand.vmem [shape: f32[1,2,1,1], index: 3, kind: output, shape index: {1}]
  %s4 = inlined_call_operand.vmem [shape: f32[1,2,1,1], index: 4, kind: output, shape index: {2}]
  %s5 = inlined_call_operand.vmem [shape: f32[1,2,1,1], index: 5, kind: output, shape index: {3}]
  %6 = xla_tuple %s2, %s3, %s4, %s5
  %s7 = sld [smem:[#allocation0]]
  $region50: #{mldcs_loss.1} parent=0
    _
  %s9 = ssub.s32 1, %s7
  %s10 = scalar_select 0, %s9, %s7
  // Predicated region
  $region2: #{mldcs_loss.1} parent=0 // pred_check
    _
  $region3: #{mldcs_loss.1} parent=0 // pred_check_branch
    %12 = sbr.rel (0) target = $region5
  $region4: #{mldcs_loss.1} parent=0 // pred_region
    %s13 = sadd.s32 0, 0
    %p14 = scmp.lt.s32.totalorder %s13, 0
    %s15 = scalar_select %p14, %s13, 0
    %s16 = smul.addr %s15, 8
    %s17 = scalar_lea.vmem %s0, %s16
    %s18 = sadd.s32 0, 0
  $region5: #{mldcs_loss.1} parent=0 // pred_fallthru
    _
  // Predicated region
  $region6: #{mldcs_loss.1} parent=0 // pred_check
    _
  $region7: #{mldcs_loss.1} parent=0 // pred_check_branch
    %20 = sbr.rel (0) target = $region9
  $region8: #{mldcs_loss.1} parent=0 // pred_region
    %s21 = sadd.s32 0, 0
    %p22 = scmp.lt.s32.totalorder %s21, 0
    %s23 = scalar_select %p22, %s21, 0
    %s24 = smul.addr %s23, 8
    %s25 = scalar_lea.vmem %s1, %s24
    %s26 = sadd.s32 0, 0
  $region9: #{mldcs_loss.1} parent=0 // pred_fallthru
    _
  %s27 = sadd.s32 0, 0
  %p28 = scmp.lt.s32.totalorder %s27, 0
  %s29 = scalar_select %p28, %s27, 0
  %s30 = smul.addr %s29, 8
  %s31 = scalar_lea.vmem %s0, %s30
  %s32 = sadd.s32 0, 0
  %p33 = scmp.lt.s32.totalorder %s32, 0
  %s34 = scalar_select %p33, %s32, 0
  %s35 = smul.addr %s34, 8
  %s36 = scalar_lea.vmem %s1, %s35
  %s37 = sadd.s32 0, 0
  %p38 = scmp.lt.s32.totalorder %s37, 0
  %s39 = scalar_select %p38, %s37, 0
  %s40 = smul.addr %s39, 8
  %s41 = scalar_lea.vmem %s0, %s40
  %s42 = sadd.s32 0, 0
  %s43 = sadd.s32 0, 0
  %p44 = scmp.lt.s32.totalorder %s43, 0
  %s45 = scalar_select %p44, %s43, 0
  %s46 = smul.addr %s45, 8
  %s47 = scalar_lea.vmem %s1, %s46
  %s48 = sadd.s32 0, 0
  %p49 = scmp.eq.s32.totalorder 0, 0
  // Predicated region
  $region10: #{mldcs_loss.1} parent=0 // pred_check
    %p50 = pneg %p49
  $region11: #{mldcs_loss.1} parent=0 // pred_check_branch
    %52 = sbr.rel (%p50) target = $region13
  $region12: #{mldcs_loss.1} parent=0 // pred_region
    %53 = vst [vmem:[#allocation2] sm:$0xff] 0.0
    %54 = vst [vmem:[#allocation2 + $0x8] sm:$0xff] 0.0
    %55 = vst [vmem:[#allocation3] sm:$0xff] 0.0
    %56 = vst [vmem:[#allocation3 + $0x8] sm:$0xff] 0.0
    %57 = vst [vmem:[#allocation4] sm:$0xff] 0.0
    %58 = vst [vmem:[#allocation4 + $0x8] sm:$0xff] 0.0
    %59 = vst [vmem:[#allocation5] sm:$0xff] 0.0
    %60 = vst [vmem:[#allocation5 + $0x8] sm:$0xff] 0.0
  $region13: #{mldcs_loss.1} parent=0 // pred_fallthru
    _
  %v61 = vld [vmem:[%s41] sm:$0xff]
  %v62 = vld [vmem:[%s41 + $0x8] sm:$0xff]
  %v63 = vld [vmem:[%s47] sm:$0xff]
  %v64 = vld [vmem:[%s47 + $0x8] sm:$0xff]
  %v65 = vsub.f32 0.0, %v61
  %v66 = vsub.f32 0.0, %v62
  %v67 = vmul.f32 %v65, 1.442695
  %v68 = vpow.pop %v67
  %v69 = vmul.f32 %v66, 1.442695
  %v70 = vpow.pop %v69
  %v71 = vadd.f32 %v68, 1.0
  %v72 = vadd.f32 %v70, 1.0
  %v73 = vrcp.pop %v71
  %v74 = vmul.f32 %v71, %v73
  %v75 = vsub.f32 1.0, %v74
  %v76 = vmul.f32 %v73, %v75
  %v77 = vadd.f32 %v73, %v76
  %vm78 = vweird.f32 %v71
  %vm79 = vweird.f32 %v73
  %vm80 = vmor %vm78, %vm79
  %v81 = vsel %vm80, %v73, %v77
  %v82 = vand.u32 2147483647, %v71
  %vm83 = vcmp.eq.f32.partialorder %v82, 8.507059e+37
  %v84 = vand.u32 %v71, 2147483648
  %v85 = vor.u32 1.1754944e-38, %v84
  %v86 = vsel %vm83, %v85, %v81
  %v87 = vrcp.pop %v72
  %v88 = vmul.f32 %v72, %v87
  %v89 = vsub.f32 1.0, %v88
  %v90 = vmul.f32 %v87, %v89
  %v91 = vadd.f32 %v87, %v90
  %vm92 = vweird.f32 %v72
  %vm93 = vweird.f32 %v87
  %vm94 = vmor %vm92, %vm93
  %v95 = vsel %vm94, %v87, %v91
  %v96 = vand.u32 2147483647, %v72
  %vm97 = vcmp.eq.f32.partialorder %v96, 8.507059e+37
  %v98 = vand.u32 %v72, 2147483648
  %v99 = vor.u32 1.1754944e-38, %v98
  %v100 = vsel %vm97, %v99, %v95
  %v101 = vsub.f32 1.0, %v86
  %v102 = vsub.f32 1.0, %v100
  %v103 = vsub.f32 1.0, %v63
  %v104 = vsub.f32 1.0, %v64
  %v105 = vmul.f32 %v101, %v101
  %v106 = vmul.f32 %v102, %v102
  %v107 = vmul.f32 %v86, %v105
  %v108 = vmul.f32 %v100, %v106
  %v109 = vmul.f32 %v86, %v86
  %v110 = vmul.f32 %v100, %v100
  %v111 = vmul.f32 %v101, %v109
  %v112 = vmul.f32 %v102, %v110
  %v113 = vmul.f32 %v107, %v63
  %v114 = vmul.f32 %v108, %v64
  %v115 = vmul.f32 %v107, %v107
  %v116 = vmul.f32 %v108, %v108
  %v117 = vmul.f32 %v63, %v63
  %v118 = vmul.f32 %v64, %v64
  %v119 = vadd.f32 %v115, %v117
  %v120 = vadd.f32 %v116, %v118
  %v121 = vmul.f32 %v111, %v63
  %v122 = vmul.f32 %v112, %v64
  %v123 = vmul.f32 %v111, %v111
  %v124 = vmul.f32 %v112, %v112
  %v125 = vmul.f32 %v103, %v103
  %v126 = vmul.f32 %v104, %v104
  %v127 = vadd.f32 %v123, %v125
  %v128 = vadd.f32 %v124, %v126
  %v129 = vld [vmem:[#allocation2] sm:$0xff]
  %v130 = vld [vmem:[#allocation2 + $0x8] sm:$0xff]
  %v131 = vadd.f32 %v113, 0.0
  %v132 = vadd.f32 %v114, 0.0
  %v133 = vadd.f32 %v129, %v131
  %v134 = vadd.f32 %v130, %v132
  %135 = vst [vmem:[#allocation2] sm:$0xff] %v133
  %136 = vst [vmem:[#allocation2 + $0x8] sm:$0xff] %v134
  %v137 = vld [vmem:[#allocation3] sm:$0xff]
  %v138 = vld [vmem:[#allocation3 + $0x8] sm:$0xff]
  %v139 = vadd.f32 %v119, 0.0
  %v140 = vadd.f32 %v120, 0.0
  %v141 = vadd.f32 %v137, %v139
  %v142 = vadd.f32 %v138, %v140
  %143 = vst [vmem:[#allocation3] sm:$0xff] %v141
  %144 = vst [vmem:[#allocation3 + $0x8] sm:$0xff] %v142
  %v145 = vld [vmem:[#allocation4] sm:$0xff]
  %v146 = vld [vmem:[#allocation4 + $0x8] sm:$0xff]
  %v147 = vadd.f32 %v121, 0.0
  %v148 = vadd.f32 %v122, 0.0
  %v149 = vadd.f32 %v145, %v147
  %v150 = vadd.f32 %v146, %v148
  %151 = vst [vmem:[#allocation4] sm:$0xff] %v149
  %152 = vst [vmem:[#allocation4 + $0x8] sm:$0xff] %v150
  %v153 = vld [vmem:[#allocation5] sm:$0xff]
  %v154 = vld [vmem:[#allocation5 + $0x8] sm:$0xff]
  %v155 = vadd.f32 %v127, 0.0
  %v156 = vadd.f32 %v128, 0.0
  %v157 = vadd.f32 %v153, %v155
  %v158 = vadd.f32 %v154, %v156
  %159 = vst [vmem:[#allocation5] sm:$0xff] %v157
  %160 = vst [vmem:[#allocation5 + $0x8] sm:$0xff] %v158
  // Predicated region
  $region14: #{mldcs_loss.1} parent=0 // pred_check
    %p161 = pneg %p49
  $region15: #{mldcs_loss.1} parent=0 // pred_check_branch
    %163 = sbr.rel (%p161) target = $region17
  $region16: #{mldcs_loss.1} parent=0 // pred_region
    %v164 = vld [vmem:[#allocation2] sm:$0xff]
    %v165 = vld [vmem:[#allocation2 + $0x8] sm:$0xff]
    %166 = vadd.xlane.f32.xlu0 %v164
    %v167 = vpop.xlane.xlu0 %166
    %168 = vadd.xlane.f32.xlu0 %v165
    %v169 = vpop.xlane.xlu0 %168
    %v170 = vrot.slane %v167, 4
    %v171 = vadd.f32 %v167, %v170
    %v172 = vrot.slane %v171, 2
    %v173 = vadd.f32 %v171, %v172
    %v174 = vrot.slane %v173, 1
    %v175 = vadd.f32 %v173, %v174
    %v176 = vrot.slane %v169, 4
    %v177 = vadd.f32 %v169, %v176
    %v178 = vrot.slane %v177, 2
    %v179 = vadd.f32 %v177, %v178
    %v180 = vrot.slane %v179, 1
    %v181 = vadd.f32 %v179, %v180
    %vm182 = vcmask 0
    %183 = vst.msk [vmem:[%s2] sm:$0x1] %vm182, %v175
    %184 = vst.msk [vmem:[%s2 + $0x1] sm:$0x1] %vm182, %v181
    %v185 = vld [vmem:[#allocation3] sm:$0xff]
    %v186 = vld [vmem:[#allocation3 + $0x8] sm:$0xff]
    %187 = vadd.xlane.f32.xlu0 %v185
    %v188 = vpop.xlane.xlu0 %187
    %189 = vadd.xlane.f32.xlu0 %v186
    %v190 = vpop.xlane.xlu0 %189
    %v191 = vrot.slane %v188, 4
    %v192 = vadd.f32 %v188, %v191
    %v193 = vrot.slane %v192, 2
    %v194 = vadd.f32 %v192, %v193
    %v195 = vrot.slane %v194, 1
    %v196 = vadd.f32 %v194, %v195
    %v197 = vrot.slane %v190, 4
    %v198 = vadd.f32 %v190, %v197
    %v199 = vrot.slane %v198, 2
    %v200 = vadd.f32 %v198, %v199
    %v201 = vrot.slane %v200, 1
    %v202 = vadd.f32 %v200, %v201
    %203 = vst.msk [vmem:[%s3] sm:$0x1] %vm182, %v196
    %204 = vst.msk [vmem:[%s3 + $0x1] sm:$0x1] %vm182, %v202
    %v205 = vld [vmem:[#allocation4] sm:$0xff]
    %v206 = vld [vmem:[#allocation4 + $0x8] sm:$0xff]
    %207 = vadd.xlane.f32.xlu0 %v205
    %v208 = vpop.xlane.xlu0 %207
    %209 = vadd.xlane.f32.xlu0 %v206
    %v210 = vpop.xlane.xlu0 %209
    %v211 = vrot.slane %v208, 4
    %v212 = vadd.f32 %v208, %v211
    %v213 = vrot.slane %v212, 2
    %v214 = vadd.f32 %v212, %v213
    %v215 = vrot.slane %v214, 1
    %v216 = vadd.f32 %v214, %v215
    %v217 = vrot.slane %v210, 4
    %v218 = vadd.f32 %v210, %v217
    %v219 = vrot.slane %v218, 2
    %v220 = vadd.f32 %v218, %v219
    %v221 = vrot.slane %v220, 1
    %v222 = vadd.f32 %v220, %v221
    %223 = vst.msk [vmem:[%s4] sm:$0x1] %vm182, %v216
    %224 = vst.msk [vmem:[%s4 + $0x1] sm:$0x1] %vm182, %v222
    %v225 = vld [vmem:[#allocation5] sm:$0xff]
    %v226 = vld [vmem:[#allocation5 + $0x8] sm:$0xff]
    %227 = vadd.xlane.f32.xlu0 %v225
    %v228 = vpop.xlane.xlu0 %227
    %229 = vadd.xlane.f32.xlu0 %v226
    %v230 = vpop.xlane.xlu0 %229
    %v231 = vrot.slane %v228, 4
    %v232 = vadd.f32 %v228, %v231
    %v233 = vrot.slane %v232, 2
    %v234 = vadd.f32 %v232, %v233
    %v235 = vrot.slane %v234, 1
    %v236 = vadd.f32 %v234, %v235
    %v237 = vrot.slane %v230, 4
    %v238 = vadd.f32 %v230, %v237
    %v239 = vrot.slane %v238, 2
    %v240 = vadd.f32 %v238, %v239
    %v241 = vrot.slane %v240, 1
    %v242 = vadd.f32 %v240, %v241
    %243 = vst.msk [vmem:[%s5] sm:$0x1] %vm182, %v236
    %244 = vst.msk [vmem:[%s5 + $0x1] sm:$0x1] %vm182, %v242
  $region17: #{mldcs_loss.1} parent=0 // pred_fallthru
    _
  // Predicated region
  $region18: #{mldcs_loss.1} parent=0 // pred_check
    _
  $region19: #{mldcs_loss.1} parent=0 // pred_check_branch
    %246 = sbr.rel (0) target = $region21
  $region20: #{mldcs_loss.1} parent=0 // pred_region
    _
  $region21: #{mldcs_loss.1} parent=0 // pred_fallthru
    _
  // Predicated region
  $region22: #{mldcs_loss.1} parent=0 // pred_check
    _
  $region23: #{mldcs_loss.1} parent=0 // pred_check_branch
    %248 = sbr.rel (0) target = $region25
  $region24: #{mldcs_loss.1} parent=0 // pred_region
    _
  $region25: #{mldcs_loss.1} parent=0 // pred_fallthru
    _
  // Predicated region
  $region26: #{mldcs_loss.1} parent=0 // pred_check
    _
  $region27: #{mldcs_loss.1} parent=0 // pred_check_branch
    %250 = sbr.rel (0) target = $region29
  $region28: #{mldcs_loss.1} parent=0 // pred_region
    _
  $region29: #{mldcs_loss.1} parent=0 // pred_fallthru
    _
  // Predicated region
  $region30: #{mldcs_loss.1} parent=0 // pred_check
    _
  $region31: #{mldcs_loss.1} parent=0 // pred_check_branch
    %252 = sbr.rel (0) target = $region33
  $region32: #{mldcs_loss.1} parent=0 // pred_region
    _
  $region33: #{mldcs_loss.1} parent=0 // pred_fallthru
    _
  // Predicated region
  $region34: #{mldcs_loss.1} parent=0 // pred_check
    _
  $region35: #{mldcs_loss.1} parent=0 // pred_check_branch
    %254 = sbr.rel (0) target = $region37
  $region36: #{mldcs_loss.1} parent=0 // pred_region
    _
  $region37: #{mldcs_loss.1} parent=0 // pred_fallthru
    _
  // Predicated region
  $region38: #{mldcs_loss.1} parent=0 // pred_check
    _
  $region39: #{mldcs_loss.1} parent=0 // pred_check_branch
    %256 = sbr.rel (0) target = $region41
  $region40: #{mldcs_loss.1} parent=0 // pred_region
    _
  $region41: #{mldcs_loss.1} parent=0 // pred_fallthru
    _
  // Predicated region
  $region42: #{mldcs_loss.1} parent=0 // pred_check
    _
  $region43: #{mldcs_loss.1} parent=0 // pred_check_branch
    %258 = sbr.rel (0) target = $region45
  $region44: #{mldcs_loss.1} parent=0 // pred_region
    _
  $region45: #{mldcs_loss.1} parent=0 // pred_fallthru
    _
  // Predicated region
  $region46: #{mldcs_loss.1} parent=0 // pred_check
    _
  $region47: #{mldcs_loss.1} parent=0 // pred_check_branch
    %260 = sbr.rel (0) target = $region49
  $region48: #{mldcs_loss.1} parent=0 // pred_region
    _
  $region49: #{mldcs_loss.1} parent=0 // pred_fallthru
    _

</llo_original>
